<compile_context>
chip_gen: v7x
topology: tpu7x:2x2x1
jax: 0.10.0
libtpu: 0.0.40
codegen_flags: <defaults>
</compile_context>

<pallas_src>
import jax
import jax.numpy as jnp
import numpy as np
from jax.experimental import pallas as pl
from jax.experimental.pallas import tpu as pltpu

_MIB = 1024 * 1024


# ---------------------------------------------------------------------------
# Kernel body
# ---------------------------------------------------------------------------
def _dy_nconv_kernel(x_ref, a_ref, o_ref):
    # Blocks (time-major kernel layout):
    #   x: (1, TL, C, V)   a: (1, TL, V, W)   out: (1, TL, C, W)
    # One batched MXU dot per block, f32 accumulation, native-dtype operands.
    # NOTE(perf): if profiling ever shows this MXU-bound (large V*W, bf16 in),
    # put the larger of {C, W} on the M side to improve MXU row fill; while the
    # op is HBM-bound (the common regime) this is a no-op, so keep it simple.
    out = jnp.einsum('lcv,lvw->lcw', x_ref[0], a_ref[0],
                     preferred_element_type=jnp.float32)
    o_ref[0] = out.astype(o_ref.dtype)


# ---------------------------------------------------------------------------
# Tiling helpers
# ---------------------------------------------------------------------------
def _vmem_capacity_bytes():
    """Physical VMEM of the current TPU generation (fallback: v7x's 64 MiB)."""
    try:
        cap = getattr(pltpu.get_tpu_info(), "vmem_capacity_bytes", None)
        if cap:
            return int(cap)
    except Exception:
        pass
    return 64 * _MIB


def _pick_time_tile(N, L, per_l_bytes, vmem_capacity, min_total_steps=8):
    """Pick time tile TL against VMEM, capped so the pipeline stays occupied.

    `per_l_bytes` must already include the 2x double-buffer factor for the
    pipelined in/out blocks. Returns (tl, budget_bytes).
    """
    # ~24 MiB working set on v5e/v6e (128 MiB VMEM), ~21 MiB on v7x (64 MiB).
    budget = min(24 * _MIB, vmem_capacity // 3)
    tl_budget = max(1, budget // max(per_l_bytes, 1))
    # Keep >= min_total_steps grid steps so double-buffering has DMAs to
    # overlap and both v7x TensorCores get balanced work.
    steps_per_batch = -(-min_total_steps // max(N, 1))      # ceil
    tl_steps = max(1, -(-L // max(steps_per_batch, 1)))     # ceil
    return max(1, min(L, tl_budget, tl_steps)), budget


# ---------------------------------------------------------------------------
# Time-major (kernel-native) entry point: zero layout plumbing
# ---------------------------------------------------------------------------
def dy_nconv_time_major(x_nlcv, a_nlvw, *, compute_dtype=None, out_dtype=None):
    """out[n,l,c,w] = sum_v x[n,l,c,v] * A[n,l,v,w]   (time-major layout).

    Preferred entry point: a caller (e.g. dy_mixprop) that keeps activations /
    adjacencies time-major avoids the three HBM round-trip transposes that the
    PyTorch-layout wrapper below must pay.
    """
    N, L, C, V = x_nlcv.shape
    Na, La, Va, W = a_nlvw.shape
    assert (N, L, V) == (Na, La, Va), (x_nlcv.shape, a_nlvw.shape)

    in_dtype = jnp.promote_types(x_nlcv.dtype, a_nlvw.dtype)
    if out_dtype is None:
        out_dtype = in_dtype
    if compute_dtype is None:
        compute_dtype = in_dtype      # pass jnp.bfloat16 to ~halve HBM traffic
    x = x_nlcv.astype(compute_dtype)
    a = a_nlvw.astype(compute_dtype)

    in_item = jnp.dtype(compute_dtype).itemsize
    out_item = jnp.dtype(out_dtype).itemsize
    # double-buffered in/out blocks + single f32 matmul result, per time step.
    per_l_bytes = 2 * ((C * V + V * W) * in_item + C * W * out_item) + C * W * 4

    vmem_cap = _vmem_capacity_bytes()
    tl, budget = _pick_time_tile(N, L, per_l_bytes, vmem_cap)
    num_t = pl.cdiv(L, tl)  # ragged last block: OOB reads padded, OOB writes masked

    cost = pl.CostEstimate(
        flops=2 * N * L * C * V * W,
        transcendentals=0,
        bytes_accessed=N * L * (C * V + V * W) * in_item + N * L * C * W * out_item,
    )
    vmem_limit = int(min(3 * vmem_cap // 4, max(32 * _MIB, 2 * budget)))

    # NOTE(perf): output lane dim is W; for W far off a multiple of 128 the
    # store uses masked vst.msk (matters most on v5e's single store slot).
    # Flattening to (TL, C*W) would need an in-kernel lane relayout, so it is
    # intentionally not done here.
    return pl.pallas_call(
        _dy_nconv_kernel,
        out_shape=jax.ShapeDtypeStruct((N, L, C, W), out_dtype),
        grid_spec=pltpu.PrefetchScalarGridSpec(
            num_scalar_prefetch=0,
            grid=(N, num_t),
            in_specs=[
                pl.BlockSpec((1, tl, C, V), lambda n, t: (n, t, 0, 0)),
                pl.BlockSpec((1, tl, V, W), lambda n, t: (n, t, 0, 0)),
            ],
            out_specs=pl.BlockSpec((1, tl, C, W), lambda n, t: (n, t, 0, 0)),
        ),
        compiler_params=pltpu.CompilerParams(
            dimension_semantics=("parallel", "parallel"),
            vmem_limit_bytes=vmem_limit,
        ),
        cost_estimate=cost,
    )(x, a)


# ---------------------------------------------------------------------------
# PyTorch-layout entry point (matches dy_nconv.forward exactly)
# ---------------------------------------------------------------------------
def dy_nconv_pallas(x_ncvl, a_nvwl, *, compute_dtype=None):
    """out[n,c,w,l] = sum_v x[n,c,v,l] * A[n,v,w,l]; same layout as PyTorch."""
    N, C, V, L = x_ncvl.shape
    Na, Va, W, La = a_nvwl.shape
    assert (N, V, L) == (Na, Va, La), (x_ncvl.shape, a_nvwl.shape)

    # TODO(synk): the two input transposes + the output transpose below are each
    # a full extra HBM read+write executed as separate XLA ops (Pallas calls do
    # not fuse with them) -- ~2-3x the kernel's own HBM traffic. They cannot be
    # folded into the kernel because the MXU needs (C,V)@(V,W) per time step and
    # Mosaic only supports swapping the last two dims in-register (no
    # minor<->major relayout). Callers that can stay time-major should call
    # dy_nconv_time_major() directly and skip this layout plumbing.
    x = jnp.transpose(x_ncvl, (0, 3, 1, 2))   # (N, L, C, V)
    a = jnp.transpose(a_nvwl, (0, 3, 1, 2))   # (N, L, V, W)
    out = dy_nconv_time_major(x, a, compute_dtype=compute_dtype)
    return jnp.transpose(out, (0, 2, 3, 1))   # (N, C, W, L)


def dy_nconv_ref(x, a):
    """Pure-JAX reference mirroring torch.einsum('ncvl,nvwl->ncwl', (x, A))."""
    return jnp.einsum('ncvl,nvwl->ncwl', x, a,
                      preferred_element_type=jnp.float32).astype(
                          jnp.promote_types(x.dtype, a.dtype))


if __name__ == "__main__":
    N, C, V, L = 2, 4, 8, 16
    W = V

    key = jax.random.PRNGKey(0)
    kx, ka = jax.random.split(key)
    x = jax.random.normal(kx, (N, C, V, L), jnp.float32)
    # A is a dynamic (per-time-step) adjacency; softmax over w keeps it well
    # scaled, matching how dy_mixprop feeds dy_nconv.
    a = jax.nn.softmax(jax.random.normal(ka, (N, V, W, L), jnp.float32), axis=2)

    out = dy_nconv_pallas(x, a)
    out = jax.block_until_ready(out)

    ref = dy_nconv_ref(x, a)
    assert out.shape == (N, C, W, L), out.shape
    np.testing.assert_allclose(np.asarray(out), np.asarray(ref),
                               rtol=1e-4, atol=1e-4)

    print("KERNEL_OK")
</pallas_src>

<mosaic_0001>
module attributes {stable_mosaic.version = 11 : i64} {
  func.func @_dy_nconv_kernel(%arg0: i32, %arg1: i32, %arg2: memref<1x4x4x8xf32, #tpu.memory_space<vmem>>, %arg3: memref<1x4x8x8xf32, #tpu.memory_space<vmem>>, %arg4: memref<1x4x4x8xf32, #tpu.memory_space<vmem>>) attributes {dimension_semantics = [#tpu.dimension_semantics<parallel>, #tpu.dimension_semantics<parallel>], iteration_bounds = array<i64: 2, 4>, scalar_prefetch = 0 : i64, scratch_operands = 0 : i64, tpu.core_type = #tpu.core_type<tc>, window_params = [{transform_indices = @transform_0, window_bounds = array<i64: 1, 4, 4, 8>}, {transform_indices = @transform_1, window_bounds = array<i64: 1, 4, 8, 8>}, {transform_indices = @transform_2, window_bounds = array<i64: 1, 4, 4, 8>}]} {
    %c0 = arith.constant 0 : index
    %c0_0 = arith.constant 0 : index
    %c0_1 = arith.constant 0 : index
    %c0_2 = arith.constant 0 : index
    %0 = vector.load %arg2[%c0, %c0_0, %c0_1, %c0_2] : memref<1x4x4x8xf32, #tpu.memory_space<vmem>>, vector<1x4x4x8xf32>
    %1 = vector.shape_cast %0 : vector<1x4x4x8xf32> to vector<4x4x8xf32>
    %c0_3 = arith.constant 0 : index
    %c0_4 = arith.constant 0 : index
    %c0_5 = arith.constant 0 : index
    %c0_6 = arith.constant 0 : index
    %2 = vector.load %arg3[%c0_3, %c0_4, %c0_5, %c0_6] : memref<1x4x8x8xf32, #tpu.memory_space<vmem>>, vector<1x4x8x8xf32>
    %3 = vector.shape_cast %2 : vector<1x4x8x8xf32> to vector<4x8x8xf32>
    "tpu.trace_start"() <{level = 10 : i32, message = "lcv,lvw->lcw"}> : () -> ()
    %cst = arith.constant dense<0.000000e+00> : vector<4x4x8xf32>
    %4 = tpu.matmul %1, %3, %cst {dimension_numbers = #tpu.dot_dimension_numbers<[2], [1], [1], [2], [0, 0, 0, 1, 1, 2], [0], [0]>} : vector<4x4x8xf32>, vector<4x8x8xf32>, vector<4x4x8xf32> -> vector<4x4x8xf32>
    "tpu.trace_stop"() : () -> ()
    %c0_7 = arith.constant 0 : index
    %c0_8 = arith.constant 0 : index
    %c0_9 = arith.constant 0 : index
    %c0_10 = arith.constant 0 : index
    %5 = vector.load %arg4[%c0_7, %c0_8, %c0_9, %c0_10] : memref<1x4x4x8xf32, #tpu.memory_space<vmem>>, vector<1x4x4x8xf32>
    %6 = vector.shape_cast %5 : vector<1x4x4x8xf32> to vector<4x4x8xf32>
    %7 = vector.shape_cast %4 : vector<4x4x8xf32> to vector<1x4x4x8xf32>
    tpu.vector_store %arg4[%c0_7, %c0_8, %c0_9, %c0_10], %7 {strides = array<i32>} : memref<1x4x4x8xf32, #tpu.memory_space<vmem>>, vector<1x4x4x8xf32>,
    return
  }
  func.func @transform_0(%arg0: i32, %arg1: i32) -> (i32, i32, i32, i32) {
    %c0_i32 = arith.constant 0 : i32
    %c0_i32_0 = arith.constant 0 : i32
    %c0_i32_1 = arith.constant 0 : i32
    return %arg0, %arg1, %c0_i32, %c0_i32_0 : i32, i32, i32, i32
  }
  func.func @transform_1(%arg0: i32, %arg1: i32) -> (i32, i32, i32, i32) {
    %c0_i32 = arith.constant 0 : i32
    %c0_i32_0 = arith.constant 0 : i32
    %c0_i32_1 = arith.constant 0 : i32
    return %arg0, %arg1, %c0_i32, %c0_i32_0 : i32, i32, i32, i32
  }
  func.func @transform_2(%arg0: i32, %arg1: i32) -> (i32, i32, i32, i32) {
    %c0_i32 = arith.constant 0 : i32
    %c0_i32_0 = arith.constant 0 : i32
    %c0_i32_1 = arith.constant 0 : i32
    return %arg0, %arg1, %c0_i32, %c0_i32_0 : i32, i32, i32, i32
  }
}

</mosaic_0001>

<llo_original>
// kernel: tpu_custom_call.1
$region0: #{tpu_custom_call.1}
  #allocation0 [shape = 'u32[]', space=smem, size = 0x4, offset = 0x4, fixed_abs, tag = 'smem constant byte address 0x4 - core index']
  #allocation1 [shape = 'u32[144,128]{1,0:T(1,128)}', space=vmem, size = 0x12000, scoped, tag = 'internal scratch']
  %s0 = inlined_call_operand.vmem [shape: f32[2,16,4,8], index: 0, kind: input, shape index: {}]
  %s1 = inlined_call_operand.vmem [shape: f32[2,16,8,8], index: 1, kind: input, shape index: {}]
  %s2 = inlined_call_operand.vmem [shape: f32[2,16,4,8], index: 2, kind: output, shape index: {}]
  %s3 = sld [smem:[#allocation0]]
  $region41: #{tpu_custom_call.1} parent=0
    _
  %s5 = ssub.s32 1, %s3
  %s6 = scalar_select 0, %s5, %s3
  loop: start=0, step=1, limit=10
  $region2: #{tpu_custom_call.1} parent=0 // loop_pre_header
    _
  $region3: #{tpu_custom_call.1} parent=0 // loop_header
    %s8 = sphi 0, %s12
    %p9 = scmp.ge.s32.totalorder %s8, 10
    %s15 = sphi 0, %s27
    %s16 = sphi 0, %s23
    %s17 = sphi 0, %s15
    %s18 = sphi 0, %s16
    %s19 = sphi 0, %s17
    %s20 = sphi 0, %s18
    %s32 = sphi 0, %s34
    %s35 = sphi 0, %s32
    %s36 = sphi 0, %s35
    %s52 = sphi 0, %s36
    %s60 = sphi 0, %s62
    %s63 = sphi 0, %s60
    %s64 = sphi 0, %s63
    %s80 = sphi 0, %s64
    %s88 = sphi 0, %s90
    %s91 = sphi 0, %s88
    %s92 = sphi 0, %s91
    %s108 = sphi 0, %s92
  $region4: #{tpu_custom_call.1} parent=0 // loop_header_branch
    %11 = sbr.rel (%p9) target = $region8
  $region5: #{tpu_custom_call.1} parent=0 // loop_body
    %s13 = ssub.s32 %s8, 1
    %s14 = ssub.s32 %s8, 2
    %s21 = sadd.s32 1, %s16
    %p22 = scmp.ge.s32.totalorder %s21, 4
    %s23 = scalar_select %p22, 0, %s21
    %s24 = sadd.s32 1, %s15
    %s25 = scalar_select %p22, %s24, %s15
    %p26 = scmp.ge.s32.totalorder %s25, 2
    %s27 = scalar_select %p26, 0, %s25
    %s28 = ssub.s32 %s15, %s27
    %s29 = ssub.s32 %s16, %s23
    %s30 = sor.u32 %s28, %s29
    %p31 = scmp.eq.s32.totalorder %s30, 0
    %s33 = sadd.s32 %s32, 1
    %s34 = scalar_select %p31, %s32, %s33
    %p37 = pneg %p31
    %p38 = scmp.eq.s32.totalorder %s8, 7
    %p39 = por %p37, %p38
    %p40 = scmp.ne.s32.totalorder %s32, %s35
    %p41 = scmp.eq.s32.totalorder %s8, 0
    %p42 = por %p40, %p41
    %p43 = scmp.ne.s32.totalorder %s32, %s35
    %p44 = scmp.eq.s32.totalorder %s13, 7
    %p45 = por %p43, %p44
    %p46 = scmp.ne.s32.totalorder %s35, %s36
    %p47 = scmp.eq.s32.totalorder %s13, 0
    %p48 = por %p46, %p47
    %p49 = scmp.ne.s32.totalorder %s35, %s36
    %p50 = scmp.eq.s32.totalorder %s14, 7
    %p51 = por %p49, %p50
    %p53 = scmp.ne.s32.totalorder %s36, %s52
    %p54 = scmp.eq.s32.totalorder %s14, 0
    %p55 = por %p53, %p54
    %s56 = ssub.s32 %s15, %s27
    %s57 = ssub.s32 %s16, %s23
    %s58 = sor.u32 %s56, %s57
    %p59 = scmp.eq.s32.totalorder %s58, 0
    %s61 = sadd.s32 %s60, 1
    %s62 = scalar_select %p59, %s60, %s61
    %p65 = pneg %p59
    %p66 = scmp.eq.s32.totalorder %s8, 7
    %p67 = por %p65, %p66
    %p68 = scmp.ne.s32.totalorder %s60, %s63
    %p69 = scmp.eq.s32.totalorder %s8, 0
    %p70 = por %p68, %p69
    %p71 = scmp.ne.s32.totalorder %s60, %s63
    %p72 = scmp.eq.s32.totalorder %s13, 7
    %p73 = por %p71, %p72
    %p74 = scmp.ne.s32.totalorder %s63, %s64
    %p75 = scmp.eq.s32.totalorder %s13, 0
    %p76 = por %p74, %p75
    %p77 = scmp.ne.s32.totalorder %s63, %s64
    %p78 = scmp.eq.s32.totalorder %s14, 7
    %p79 = por %p77, %p78
    %p81 = scmp.ne.s32.totalorder %s64, %s80
    %p82 = scmp.eq.s32.totalorder %s14, 0
    %p83 = por %p81, %p82
    %s84 = ssub.s32 %s15, %s27
    %s85 = ssub.s32 %s16, %s23
    %s86 = sor.u32 %s84, %s85
    %p87 = scmp.eq.s32.totalorder %s86, 0
    %s89 = sadd.s32 %s88, 1
    %s90 = scalar_select %p87, %s88, %s89
    %p93 = pneg %p87
    %p94 = scmp.eq.s32.totalorder %s8, 7
    %p95 = por %p93, %p94
    %p96 = scmp.ne.s32.totalorder %s88, %s91
    %p97 = scmp.eq.s32.totalorder %s8, 0
    %p98 = por %p96, %p97
    %p99 = scmp.ne.s32.totalorder %s88, %s91
    %p100 = scmp.eq.s32.totalorder %s13, 7
    %p101 = por %p99, %p100
    %p102 = scmp.ne.s32.totalorder %s91, %s92
    %p103 = scmp.eq.s32.totalorder %s13, 0
    %p104 = por %p102, %p103
    %p105 = scmp.ne.s32.totalorder %s91, %s92
    %p106 = scmp.eq.s32.totalorder %s14, 7
    %p107 = por %p105, %p106
    %p109 = scmp.ne.s32.totalorder %s92, %s108
    %p110 = scmp.eq.s32.totalorder %s14, 0
    %p111 = por %p109, %p110
    %p112 = scmp.le.s32.totalorder 1, %s8
    %p113 = scmp.lt.s32.totalorder %s8, 9
    %p114 = pnand %p112, %p113
    %p115 = pneg %p114
    // Predicated region
    $region9: #{tpu_custom_call.1} parent=5 // pred_check
      _
    $region10: #{tpu_custom_call.1} parent=5 // pred_check_branch
      %117 = sbr.rel (%p114) target = $region12
    $region11: #{tpu_custom_call.1} parent=5 // pred_region
      %s118 = ssub.s32 %s8, 1
    $region12: #{tpu_custom_call.1} parent=5 // pred_fallthru
      _
    %p119 = scmp.lt.s32.totalorder %s8, 8
    // Predicated region
    $region13: #{tpu_custom_call.1} parent=5 // pred_check
      %p120 = pneg %p119
    $region14: #{tpu_custom_call.1} parent=5 // pred_check_branch
      %122 = sbr.rel (%p120) target = $region16
    $region15: #{tpu_custom_call.1} parent=5 // pred_region
      // Predicated region
      $region17: #{tpu_custom_call.1} parent=15 // pred_check
        %p123 = pneg %p42
      $region18: #{tpu_custom_call.1} parent=15 // pred_check_branch
        %125 = sbr.rel (%p123) target = $region20
      $region19: #{tpu_custom_call.1} parent=15 // pred_region
        %s126 = smul.u32 4, %s16
        %p127 = scmp.lt.s32.totalorder %s15, 1
        %s128 = scalar_select %p127, %s15, 1
        %p129 = scmp.lt.s32.totalorder %s126, 15
        %s130 = scalar_select %p129, %s126, 15
        %s131 = smul.addr %s128, 16
        %s132 = sadd.s32 %s130, %s131
        %s133 = smul.addr %s132, 4
        %s134 = scalar_lea.vmem %s0, %s133
        %s135 = smul.u32 4, %s16
      $region20: #{tpu_custom_call.1} parent=15 // pred_fallthru
        _
      // Predicated region
      $region21: #{tpu_custom_call.1} parent=15 // pred_check
        %p136 = pneg %p70
      $region22: #{tpu_custom_call.1} parent=15 // pred_check_branch
        %138 = sbr.rel (%p136) target = $region24
      $region23: #{tpu_custom_call.1} parent=15 // pred_region
        %s139 = smul.u32 4, %s16
        %p140 = scmp.lt.s32.totalorder %s15, 1
        %s141 = scalar_select %p140, %s15, 1
        %p142 = scmp.lt.s32.totalorder %s139, 15
        %s143 = scalar_select %p142, %s139, 15
        %s144 = smul.addr %s141, 16
        %s145 = sadd.s32 %s143, %s144
        %s146 = smul.addr %s145, 8
        %s147 = scalar_lea.vmem %s1, %s146
        %s148 = smul.u32 4, %s16
      $region24: #{tpu_custom_call.1} parent=15 // pred_fallthru
        _
    $region16: #{tpu_custom_call.1} parent=5 // pred_fallthru
      _
    %p149 = scmp.le.s32.totalorder 1, %s8
    %p150 = scmp.lt.s32.totalorder %s8, 9
    %p151 = pnand %p149, %p150
    %p152 = pneg %p151
    // Predicated region
    $region25: #{tpu_custom_call.1} parent=5 // pred_check
      _
    $region26: #{tpu_custom_call.1} parent=5 // pred_check_branch
      %154 = sbr.rel (%p151) target = $region28
    $region27: #{tpu_custom_call.1} parent=5 // pred_region
      %s155 = ssub.s32 %s8, 1
      %s156 = smul.u32 4, %s18
      %p157 = scmp.lt.s32.totalorder %s17, 1
      %s158 = scalar_select %p157, %s17, 1
      %p159 = scmp.lt.s32.totalorder %s156, 15
      %s160 = scalar_select %p159, %s156, 15
      %s161 = smul.addr %s158, 16
      %s162 = sadd.s32 %s160, %s161
      %s163 = smul.addr %s162, 4
      %s164 = scalar_lea.vmem %s0, %s163
      %p165 = pneg %p48
      %p166 = pneg %p45
      %s167 = smul.u32 4, %s18
      %p168 = scmp.lt.s32.totalorder %s17, 1
      %s169 = scalar_select %p168, %s17, 1
      %p170 = scmp.lt.s32.totalorder %s167, 15
      %s171 = scalar_select %p170, %s167, 15
      %s172 = smul.addr %s169, 16
      %s173 = sadd.s32 %s171, %s172
      %s174 = smul.addr %s173, 8
      %s175 = scalar_lea.vmem %s1, %s174
      %p176 = pneg %p76
      %p177 = pneg %p73
      %p178 = pneg %p104
      %p179 = pneg %p101
      %s180 = smul.u32 4, %s18
      %p181 = scmp.lt.s32.totalorder %s17, 1
      %s182 = scalar_select %p181, %s17, 1
      %p183 = scmp.lt.s32.totalorder %s180, 15
      %s184 = scalar_select %p183, %s180, 15
      %s185 = smul.addr %s182, 16
      %s186 = sadd.s32 %s184, %s185
      %s187 = smul.addr %s186, 4
      %s188 = scalar_lea.vmem %s2, %s187
      %s189 = smul.u32 4, %s18
      %p190 = scmp.lt.s32.totalorder %s17, 1
      %s191 = scalar_select %p190, %s17, 1
      %p192 = scmp.lt.s32.totalorder %s189, 15
      %s193 = scalar_select %p192, %s189, 15
      %s194 = smul.addr %s191, 16
      %s195 = sadd.s32 %s193, %s194
      %s196 = smul.addr %s195, 4
      %s197 = scalar_lea.vmem %s0, %s196
      %s198 = smul.u32 4, %s18
      %s199 = smul.u32 4, %s18
      %p200 = scmp.lt.s32.totalorder %s17, 1
      %s201 = scalar_select %p200, %s17, 1
      %p202 = scmp.lt.s32.totalorder %s199, 15
      %s203 = scalar_select %p202, %s199, 15
      %s204 = smul.addr %s201, 16
      %s205 = sadd.s32 %s203, %s204
      %s206 = smul.addr %s205, 8
      %s207 = scalar_lea.vmem %s1, %s206
      %s208 = smul.u32 4, %s18
      %s209 = smul.u32 4, %s18
      %p210 = scmp.lt.s32.totalorder %s17, 1
      %s211 = scalar_select %p210, %s17, 1
      %p212 = scmp.lt.s32.totalorder %s209, 15
      %s213 = scalar_select %p212, %s209, 15
      %s214 = smul.addr %s211, 16
      %s215 = sadd.s32 %s213, %s214
      %s216 = smul.addr %s215, 4
      %s217 = scalar_lea.vmem %s2, %s216
      %s218 = smul.u32 4, %s18
      %v219 = vld [vmem:[%s197] sm:$0xf]
      %v220 = vld [vmem:[%s197 + $0x4] sm:$0xf]
      %v221 = vld [vmem:[%s197 + $0x8] sm:$0xf]
      %v222 = vld [vmem:[%s197 + $0xc] sm:$0xf]
      %v223 = vld [vmem:[%s207] sm:$0xff]
      %v224 = vld [vmem:[%s207 + $0x8] sm:$0xff]
      %v225 = vld [vmem:[%s207 + $0x10] sm:$0xff]
      %v226 = vld [vmem:[%s207 + $0x18] sm:$0xff]
      %vm227 = vcmask 64512
      %v229 = vsel %vm227, %v219, 0
      %231 = vmatprep.subr.mxu0 0.0
      %232 = vmatpush1.msra.mxu0 %v223
      %233 = vmatprep.subr.mxu0 0.0
      %234 = vmatpush1.msra.mxu0 0.0
      %235 = vmatprep.subr.mxu0 0.0
      %236 = vmatpush1.msra.mxu0 0.0
      %237 = vmatprep.subr.mxu0 0.0
      %238 = vmatpush1.msra.mxu0 0.0
      %239 = vmatprep.subr.mxu0 0.0
      %240 = vmatpush1.msra.mxu0 0.0
      %241 = vmatprep.subr.mxu0 0.0
      %242 = vmatpush1.msra.mxu0 0.0
      %243 = vmatprep.subr.mxu0 0.0
      %244 = vmatpush1.msra.mxu0 0.0
      %245 = vmatprep.subr.mxu0 0.0
      %246 = vmatpush1.msra.mxu0 0.0
      %247 = vmatprep.subr.mxu0 0.0
      %248 = vmatpush1.msra.mxu0 0.0
      %249 = vmatprep.subr.mxu0 0.0
      %250 = vmatpush1.msra.mxu0 0.0
      %251 = vmatprep.subr.mxu0 0.0
      %252 = vmatpush1.msra.mxu0 0.0
      %253 = vmatprep.subr.mxu0 0.0
      %254 = vmatpush1.msra.mxu0 0.0
      %255 = vmatprep.subr.mxu0 0.0
      %256 = vmatpush1.msra.mxu0 0.0
      %257 = vmatprep.subr.mxu0 0.0
      %258 = vmatpush1.msra.mxu0 0.0
      %259 = vmatprep.subr.mxu0 0.0
      %260 = vmatpush1.msra.mxu0 0.0
      %261 = vmatprep.subr.mxu0 0.0
      %262 = vmatpush1.msra.mxu0 0.0
      %263 = vmatprep.subr.mxu0 0.0
      %264 = vmatpush1.msra.mxu0 0.0
      %265 = vmatprep.subr.mxu0 0.0
      %266 = vmatpush1.msra.mxu0 0.0
      %267 = vmatprep.subr.mxu0 0.0
      %268 = vmatpush1.msra.mxu0 0.0
      %269 = vmatprep.subr.mxu0 0.0
      %270 = vmatpush1.msra.mxu0 0.0
      %271 = vmatprep.subr.mxu0 0.0
      %272 = vmatpush1.msra.mxu0 0.0
      %273 = vmatprep.subr.mxu0 0.0
      %274 = vmatpush1.msra.mxu0 0.0
      %275 = vmatprep.subr.mxu0 0.0
      %276 = vmatpush1.msra.mxu0 0.0
      %277 = vmatprep.subr.mxu0 0.0
      %278 = vmatpush1.msra.mxu0 0.0
      %279 = vmatprep.subr.mxu0 0.0
      %280 = vmatpush1.msra.mxu0 0.0
      %281 = vmatprep.subr.mxu0 0.0
      %282 = vmatpush1.msra.mxu0 0.0
      %283 = vmatprep.subr.mxu0 0.0
      %284 = vmatpush1.msra.mxu0 0.0
      %285 = vmatprep.subr.mxu0 0.0
      %286 = vmatpush1.msra.mxu0 0.0
      %287 = vmatprep.subr.mxu0 0.0
      %288 = vmatpush1.msra.mxu0 0.0
      %289 = vmatprep.subr.mxu0 0.0
      %290 = vmatpush1.msra.mxu0 0.0
      %291 = vmatprep.subr.mxu0 0.0
      %292 = vmatpush1.msra.mxu0 0.0
      %293 = vmatprep.subr.mxu0 0.0
      %294 = vmatpush1.msra.mxu0 0.0
      %295 = vmatprep.mubr.f32.mxu0 0.0
      %296 = vmatmul.mubr.f32.gmra.mrb[0].mxu0 %v229
      %v297 = vpop.f32.mrb[0].mxu0
      %v298 = vadd.f32 0.0, %v297
      %v299 = vpop.f32.mrb[0].mxu0
      %300 = vdwg.mxu0
      %v302 = vsel %vm227, %v220, 0
      %304 = vmatprep.subr.mxu0 0.0
      %305 = vmatpush1.msra.mxu0 %v224
      %306 = vmatprep.subr.mxu0 0.0
      %307 = vmatpush1.msra.mxu0 0.0
      %308 = vmatprep.subr.mxu0 0.0
      %309 = vmatpush1.msra.mxu0 0.0
      %310 = vmatprep.subr.mxu0 0.0
      %311 = vmatpush1.msra.mxu0 0.0
      %312 = vmatprep.subr.mxu0 0.0
      %313 = vmatpush1.msra.mxu0 0.0
      %314 = vmatprep.subr.mxu0 0.0
      %315 = vmatpush1.msra.mxu0 0.0
      %316 = vmatprep.subr.mxu0 0.0
      %317 = vmatpush1.msra.mxu0 0.0
      %318 = vmatprep.subr.mxu0 0.0
      %319 = vmatpush1.msra.mxu0 0.0
      %320 = vmatprep.subr.mxu0 0.0
      %321 = vmatpush1.msra.mxu0 0.0
      %322 = vmatprep.subr.mxu0 0.0
      %323 = vmatpush1.msra.mxu0 0.0
      %324 = vmatprep.subr.mxu0 0.0
      %325 = vmatpush1.msra.mxu0 0.0
      %326 = vmatprep.subr.mxu0 0.0
      %327 = vmatpush1.msra.mxu0 0.0
      %328 = vmatprep.subr.mxu0 0.0
      %329 = vmatpush1.msra.mxu0 0.0
      %330 = vmatprep.subr.mxu0 0.0
      %331 = vmatpush1.msra.mxu0 0.0
      %332 = vmatprep.subr.mxu0 0.0
      %333 = vmatpush1.msra.mxu0 0.0
      %334 = vmatprep.subr.mxu0 0.0
      %335 = vmatpush1.msra.mxu0 0.0
      %336 = vmatprep.subr.mxu0 0.0
      %337 = vmatpush1.msra.mxu0 0.0
      %338 = vmatprep.subr.mxu0 0.0
      %339 = vmatpush1.msra.mxu0 0.0
      %340 = vmatprep.subr.mxu0 0.0
      %341 = vmatpush1.msra.mxu0 0.0
      %342 = vmatprep.subr.mxu0 0.0
      %343 = vmatpush1.msra.mxu0 0.0
      %344 = vmatprep.subr.mxu0 0.0
      %345 = vmatpush1.msra.mxu0 0.0
      %346 = vmatprep.subr.mxu0 0.0
      %347 = vmatpush1.msra.mxu0 0.0
      %348 = vmatprep.subr.mxu0 0.0
      %349 = vmatpush1.msra.mxu0 0.0
      %350 = vmatprep.subr.mxu0 0.0
      %351 = vmatpush1.msra.mxu0 0.0
      %352 = vmatprep.subr.mxu0 0.0
      %353 = vmatpush1.msra.mxu0 0.0
      %354 = vmatprep.subr.mxu0 0.0
      %355 = vmatpush1.msra.mxu0 0.0
      %356 = vmatprep.subr.mxu0 0.0
      %357 = vmatpush1.msra.mxu0 0.0
      %358 = vmatprep.subr.mxu0 0.0
      %359 = vmatpush1.msra.mxu0 0.0
      %360 = vmatprep.subr.mxu0 0.0
      %361 = vmatpush1.msra.mxu0 0.0
      %362 = vmatprep.subr.mxu0 0.0
      %363 = vmatpush1.msra.mxu0 0.0
      %364 = vmatprep.subr.mxu0 0.0
      %365 = vmatpush1.msra.mxu0 0.0
      %366 = vmatprep.subr.mxu0 0.0
      %367 = vmatpush1.msra.mxu0 0.0
      %368 = vmatprep.mubr.f32.mxu0 0.0
      %369 = vmatmul.mubr.f32.gmra.mrb[0].mxu0 %v302
      %v370 = vpop.f32.mrb[0].mxu0
      %v371 = vadd.f32 0.0, %v370
      %v372 = vpop.f32.mrb[0].mxu0
      %373 = vdwg.mxu0
      %v375 = vsel %vm227, %v221, 0
      %377 = vmatprep.subr.mxu0 0.0
      %378 = vmatpush1.msra.mxu0 %v225
      %379 = vmatprep.subr.mxu0 0.0
      %380 = vmatpush1.msra.mxu0 0.0
      %381 = vmatprep.subr.mxu0 0.0
      %382 = vmatpush1.msra.mxu0 0.0
      %383 = vmatprep.subr.mxu0 0.0
      %384 = vmatpush1.msra.mxu0 0.0
      %385 = vmatprep.subr.mxu0 0.0
      %386 = vmatpush1.msra.mxu0 0.0
      %387 = vmatprep.subr.mxu0 0.0
      %388 = vmatpush1.msra.mxu0 0.0
      %389 = vmatprep.subr.mxu0 0.0
      %390 = vmatpush1.msra.mxu0 0.0
      %391 = vmatprep.subr.mxu0 0.0
      %392 = vmatpush1.msra.mxu0 0.0
      %393 = vmatprep.subr.mxu0 0.0
      %394 = vmatpush1.msra.mxu0 0.0
      %395 = vmatprep.subr.mxu0 0.0
      %396 = vmatpush1.msra.mxu0 0.0
      %397 = vmatprep.subr.mxu0 0.0
      %398 = vmatpush1.msra.mxu0 0.0
      %399 = vmatprep.subr.mxu0 0.0
      %400 = vmatpush1.msra.mxu0 0.0
      %401 = vmatprep.subr.mxu0 0.0
      %402 = vmatpush1.msra.mxu0 0.0
      %403 = vmatprep.subr.mxu0 0.0
      %404 = vmatpush1.msra.mxu0 0.0
      %405 = vmatprep.subr.mxu0 0.0
      %406 = vmatpush1.msra.mxu0 0.0
      %407 = vmatprep.subr.mxu0 0.0
      %408 = vmatpush1.msra.mxu0 0.0
      %409 = vmatprep.subr.mxu0 0.0
      %410 = vmatpush1.msra.mxu0 0.0
      %411 = vmatprep.subr.mxu0 0.0
      %412 = vmatpush1.msra.mxu0 0.0
      %413 = vmatprep.subr.mxu0 0.0
      %414 = vmatpush1.msra.mxu0 0.0
      %415 = vmatprep.subr.mxu0 0.0
      %416 = vmatpush1.msra.mxu0 0.0
      %417 = vmatprep.subr.mxu0 0.0
      %418 = vmatpush1.msra.mxu0 0.0
      %419 = vmatprep.subr.mxu0 0.0
      %420 = vmatpush1.msra.mxu0 0.0
      %421 = vmatprep.subr.mxu0 0.0
      %422 = vmatpush1.msra.mxu0 0.0
      %423 = vmatprep.subr.mxu0 0.0
      %424 = vmatpush1.msra.mxu0 0.0
      %425 = vmatprep.subr.mxu0 0.0
      %426 = vmatpush1.msra.mxu0 0.0
      %427 = vmatprep.subr.mxu0 0.0
      %428 = vmatpush1.msra.mxu0 0.0
      %429 = vmatprep.subr.mxu0 0.0
      %430 = vmatpush1.msra.mxu0 0.0
      %431 = vmatprep.subr.mxu0 0.0
      %432 = vmatpush1.msra.mxu0 0.0
      %433 = vmatprep.subr.mxu0 0.0
      %434 = vmatpush1.msra.mxu0 0.0
      %435 = vmatprep.subr.mxu0 0.0
      %436 = vmatpush1.msra.mxu0 0.0
      %437 = vmatprep.subr.mxu0 0.0
      %438 = vmatpush1.msra.mxu0 0.0
      %439 = vmatprep.subr.mxu0 0.0
      %440 = vmatpush1.msra.mxu0 0.0
      %441 = vmatprep.mubr.f32.mxu0 0.0
      %442 = vmatmul.mubr.f32.gmra.mrb[0].mxu0 %v375
      %v443 = vpop.f32.mrb[0].mxu0
      %v444 = vadd.f32 0.0, %v443
      %v445 = vpop.f32.mrb[0].mxu0
      %446 = vdwg.mxu0
      %v448 = vsel %vm227, %v222, 0
      %450 = vmatprep.subr.mxu0 0.0
      %451 = vmatpush1.msra.mxu0 %v226
      %452 = vmatprep.subr.mxu0 0.0
      %453 = vmatpush1.msra.mxu0 0.0
      %454 = vmatprep.subr.mxu0 0.0
      %455 = vmatpush1.msra.mxu0 0.0
      %456 = vmatprep.subr.mxu0 0.0
      %457 = vmatpush1.msra.mxu0 0.0
      %458 = vmatprep.subr.mxu0 0.0
      %459 = vmatpush1.msra.mxu0 0.0
      %460 = vmatprep.subr.mxu0 0.0
      %461 = vmatpush1.msra.mxu0 0.0
      %462 = vmatprep.subr.mxu0 0.0
      %463 = vmatpush1.msra.mxu0 0.0
      %464 = vmatprep.subr.mxu0 0.0
      %465 = vmatpush1.msra.mxu0 0.0
      %466 = vmatprep.subr.mxu0 0.0
      %467 = vmatpush1.msra.mxu0 0.0
      %468 = vmatprep.subr.mxu0 0.0
      %469 = vmatpush1.msra.mxu0 0.0
      %470 = vmatprep.subr.mxu0 0.0
      %471 = vmatpush1.msra.mxu0 0.0
      %472 = vmatprep.subr.mxu0 0.0
      %473 = vmatpush1.msra.mxu0 0.0
      %474 = vmatprep.subr.mxu0 0.0
      %475 = vmatpush1.msra.mxu0 0.0
      %476 = vmatprep.subr.mxu0 0.0
      %477 = vmatpush1.msra.mxu0 0.0
      %478 = vmatprep.subr.mxu0 0.0
      %479 = vmatpush1.msra.mxu0 0.0
      %480 = vmatprep.subr.mxu0 0.0
      %481 = vmatpush1.msra.mxu0 0.0
      %482 = vmatprep.subr.mxu0 0.0
      %483 = vmatpush1.msra.mxu0 0.0
      %484 = vmatprep.subr.mxu0 0.0
      %485 = vmatpush1.msra.mxu0 0.0
      %486 = vmatprep.subr.mxu0 0.0
      %487 = vmatpush1.msra.mxu0 0.0
      %488 = vmatprep.subr.mxu0 0.0
      %489 = vmatpush1.msra.mxu0 0.0
      %490 = vmatprep.subr.mxu0 0.0
      %491 = vmatpush1.msra.mxu0 0.0
      %492 = vmatprep.subr.mxu0 0.0
      %493 = vmatpush1.msra.mxu0 0.0
      %494 = vmatprep.subr.mxu0 0.0
      %495 = vmatpush1.msra.mxu0 0.0
      %496 = vmatprep.subr.mxu0 0.0
      %497 = vmatpush1.msra.mxu0 0.0
      %498 = vmatprep.subr.mxu0 0.0
      %499 = vmatpush1.msra.mxu0 0.0
      %500 = vmatprep.subr.mxu0 0.0
      %501 = vmatpush1.msra.mxu0 0.0
      %502 = vmatprep.subr.mxu0 0.0
      %503 = vmatpush1.msra.mxu0 0.0
      %504 = vmatprep.subr.mxu0 0.0
      %505 = vmatpush1.msra.mxu0 0.0
      %506 = vmatprep.subr.mxu0 0.0
      %507 = vmatpush1.msra.mxu0 0.0
      %508 = vmatprep.subr.mxu0 0.0
      %509 = vmatpush1.msra.mxu0 0.0
      %510 = vmatprep.subr.mxu0 0.0
      %511 = vmatpush1.msra.mxu0 0.0
      %512 = vmatprep.subr.mxu0 0.0
      %513 = vmatpush1.msra.mxu0 0.0
      %514 = vmatprep.mubr.f32.mxu0 0.0
      %515 = vmatmul.mubr.f32.gmra.mrb[0].mxu0 %v448
      %v516 = vpop.f32.mrb[0].mxu0
      %v517 = vadd.f32 0.0, %v516
      %v518 = vpop.f32.mrb[0].mxu0
      %519 = vdwg.mxu0
      %vm520 = vcmask 60416
      %521 = vst.msk [vmem:[%s217] sm:$0xf] %vm520, %v298
      %522 = vst.msk [vmem:[%s217 + $0x4] sm:$0xf] %vm520, %v371
      %523 = vst.msk [vmem:[%s217 + $0x8] sm:$0xf] %vm520, %v444
      %524 = vst.msk [vmem:[%s217 + $0xc] sm:$0xf] %vm520, %v517
      %s525 = smul.u32 4, %s18
      %p526 = scmp.lt.s32.totalorder %s17, 1
      %s527 = scalar_select %p526, %s17, 1
      %p528 = scmp.lt.s32.totalorder %s525, 15
      %s529 = scalar_select %p528, %s525, 15
      %s530 = smul.addr %s527, 16
      %s531 = sadd.s32 %s529, %s530
      %s532 = smul.addr %s531, 4
      %s533 = scalar_lea.vmem %s2, %s532
      // Predicated region
      $region29: #{tpu_custom_call.1} parent=27 // pred_check
        %p534 = pneg %p101
      $region30: #{tpu_custom_call.1} parent=27 // pred_check_branch
        %536 = sbr.rel (%p534) target = $region32
      $region31: #{tpu_custom_call.1} parent=27 // pred_region
        %s537 = smul.u32 4, %s18
      $region32: #{tpu_custom_call.1} parent=27 // pred_fallthru
        _
    $region28: #{tpu_custom_call.1} parent=5 // pred_fallthru
      _
    %p538 = scmp.le.s32.totalorder 2, %s8
    // Predicated region
    $region33: #{tpu_custom_call.1} parent=5 // pred_check
      %p539 = pneg %p538
    $region34: #{tpu_custom_call.1} parent=5 // pred_check_branch
      %541 = sbr.rel (%p539) target = $region36
    $region35: #{tpu_custom_call.1} parent=5 // pred_region
      %s542 = ssub.s32 %s8, 2
      // Predicated region
      $region37: #{tpu_custom_call.1} parent=35 // pred_check
        %p543 = pneg %p107
      $region38: #{tpu_custom_call.1} parent=35 // pred_check_branch
        %545 = sbr.rel (%p543) target = $region40
      $region39: #{tpu_custom_call.1} parent=35 // pred_region
        %s546 = smul.u32 4, %s20
        %p547 = scmp.lt.s32.totalorder %s19, 1
        %s548 = scalar_select %p547, %s19, 1
        %p549 = scmp.lt.s32.totalorder %s546, 15
        %s550 = scalar_select %p549, %s546, 15
        %s551 = smul.addr %s548, 16
        %s552 = sadd.s32 %s550, %s551
        %s553 = smul.addr %s552, 4
        %s554 = scalar_lea.vmem %s2, %s553
      $region40: #{tpu_custom_call.1} parent=35 // pred_fallthru
        _
    $region36: #{tpu_custom_call.1} parent=5 // pred_fallthru
      _
  $region6: #{tpu_custom_call.1} parent=0 // loop_footer
    %s12 = sadd.s32 1, %s8
  $region7: #{tpu_custom_call.1} parent=0 // loop_footer_branch
    %7 = sbr.rel target = $region3
  $region8: #{tpu_custom_call.1} parent=0 // loop_exit
    _

</llo_original>
